<compile_context>
chip_gen: v6e
topology: v6e:2x2x1
jax: 0.10.0
libtpu: 0.0.40
codegen_flags: <defaults>
</compile_context>

<pallas_src>
import numpy as np

import jax
import jax.numpy as jnp
from jax.experimental import pallas as pl
from jax.experimental.pallas import tpu as pltpu

LANE = 128  # lane quantum; everything is padded to multiples of this.


# --------------------------------------------------------------------------
# Helpers
# --------------------------------------------------------------------------
def _round_up(n, q):
    return ((n + q - 1) // q) * q


def _tile(n, target, quantum):
    """Largest multiple of `quantum` that divides n and is <= target.

    n is always padded to a multiple of `quantum` by the wrappers, so this
    always returns a proper tile (>= quantum) and never the whole dimension.
    """
    t = min(target, n)
    t = (t // quantum) * quantum
    while t >= quantum:
        if n % t == 0:
            return t
        t -= quantum
    return n  # unreachable when n % quantum == 0


def build_block_schedule(adj_bool_np, tm, tk):
    """Per row-tile compacted list of k-block indices that contain nonzeros.

    Returns (blk_idx [n_rt, max_nnz] int32, blk_cnt [n_rt] int32, max_nnz).
    Padded entries point at block 0 (a valid block) and are gated off in the
    kernel via blk_cnt.
    """
    n = adj_bool_np.shape[0]
    n_rt, n_kt = n // tm, n // tk
    blk = adj_bool_np.reshape(n_rt, tm, n_kt, tk).any(axis=(1, 3))  # [n_rt,n_kt]
    counts = blk.sum(axis=1).astype(np.int32)
    max_nnz = max(int(counts.max()), 1)
    idx = np.zeros((n_rt, max_nnz), dtype=np.int32)
    for r in range(n_rt):
        nz = np.nonzero(blk[r])[0].astype(np.int32)
        idx[r, : nz.size] = nz
    return jnp.asarray(idx), jnp.asarray(counts), max_nnz


# --------------------------------------------------------------------------
# Kernels
#   grid = (row_tiles, max_nnz_blocks); k (neighbor reduction) innermost.
#   acc[i] = sum_{k in nonzero blocks} A[i,k] @ X[k]      (f32 VMEM scratch)
#   hidden:  out[i] = relu((acc[i]*inv_deg[i]) @ Wl + X[i] @ Wr) * scale + shift
#   final :  out[i] = log_softmax((acc[i]*inv_deg[i]) @ Wl + X[i] @ Wr + b)
# --------------------------------------------------------------------------
def _sage_hidden_kernel(blk_idx_ref, blk_cnt_ref, a_ref, xk_ref, xi_ref,
                        wl_ref, wr_ref, inv_deg_ref, scale_ref, shift_ref,
                        o_ref, acc_ref):
    i = pl.program_id(0)
    k = pl.program_id(1)

    @pl.when(k == 0)
    def _():
        acc_ref[...] = jnp.zeros_like(acc_ref)

    @pl.when(k < blk_cnt_ref[i])
    def _():
        a = a_ref[...].astype(jnp.bfloat16)          # int8 {0,1} -> bf16 (VPU)
        acc_ref[...] += jnp.dot(a, xk_ref[...],
                                preferred_element_type=jnp.float32)

    @pl.when(k == pl.num_programs(1) - 1)
    def _():
        agg = (acc_ref[...] * inv_deg_ref[...]).astype(jnp.bfloat16)
        h = jnp.dot(agg, wl_ref[...], preferred_element_type=jnp.float32)
        h = h + jnp.dot(xi_ref[...], wr_ref[...],
                        preferred_element_type=jnp.float32)
        h = h * scale_ref[...] + shift_ref[...]       # BN(eval) + folded bias
        o_ref[...] = jnp.maximum(h, 0.0).astype(o_ref.dtype)


def _sage_final_kernel(blk_idx_ref, blk_cnt_ref, a_ref, xk_ref, xi_ref,
                       wl_ref, wr_ref, inv_deg_ref, b_ref,
                       o_ref, acc_ref):
    i = pl.program_id(0)
    k = pl.program_id(1)

    @pl.when(k == 0)
    def _():
        acc_ref[...] = jnp.zeros_like(acc_ref)

    @pl.when(k < blk_cnt_ref[i])
    def _():
        a = a_ref[...].astype(jnp.bfloat16)
        acc_ref[...] += jnp.dot(a, xk_ref[...],
                                preferred_element_type=jnp.float32)

    @pl.when(k == pl.num_programs(1) - 1)
    def _():
        agg = (acc_ref[...] * inv_deg_ref[...]).astype(jnp.bfloat16)
        h = jnp.dot(agg, wl_ref[...], preferred_element_type=jnp.float32)
        h = h + jnp.dot(xi_ref[...], wr_ref[...],
                        preferred_element_type=jnp.float32)
        h = h + b_ref[...]                            # pad lanes hold -1e30
        m = jnp.max(h, axis=-1, keepdims=True)
        z = h - m
        lse = jnp.log(jnp.sum(jnp.exp(z), axis=-1, keepdims=True))
        o_ref[...] = (z - lse).astype(o_ref.dtype)


# --------------------------------------------------------------------------
# Shared layer wrapper (one fused pallas_call per layer)
# --------------------------------------------------------------------------
def _sage_layer_call(kernel, extra_params, out_dtype,
                     a_i8, x, wl, wr, inv_deg,
                     blk_idx, blk_cnt, max_nnz, tm, tk):
    n = a_i8.shape[0]
    cin = x.shape[1]
    cout = wl.shape[1]
    grid = (n // tm, max_nnz)

    const_map = lambda i, k, *_: (0, 0)
    in_specs = [
        # A tile: k-block index comes from the scalar-prefetched schedule.
        pl.BlockSpec((tm, tk), lambda i, k, bi, bc: (i, bi[i, k])),
        # Neighbor rows of X for the selected k-block.
        pl.BlockSpec((tk, cin), lambda i, k, bi, bc: (bi[i, k], 0)),
        # Self rows of X (resident across the k loop).
        pl.BlockSpec((tm, cin), lambda i, k, *_: (i, 0)),
        pl.BlockSpec((cin, cout), const_map),            # Wl (resident)
        pl.BlockSpec((cin, cout), const_map),            # Wr (resident)
        pl.BlockSpec((tm, 1), lambda i, k, *_: (i, 0)),  # inv_deg (f32)
    ] + [pl.BlockSpec((1, cout), const_map) for _ in extra_params]

    return pl.pallas_call(
        kernel,
        out_shape=jax.ShapeDtypeStruct((n, cout), out_dtype),
        grid_spec=pltpu.PrefetchScalarGridSpec(
            num_scalar_prefetch=2,          # blk_idx, blk_cnt -> SMEM
            grid=grid,
            in_specs=in_specs,
            out_specs=pl.BlockSpec((tm, cout), lambda i, k, *_: (i, 0)),
            scratch_shapes=[pltpu.VMEM((tm, cin), jnp.float32)],
        ),
        compiler_params=pltpu.CompilerParams(
            dimension_semantics=("parallel", "arbitrary"),
            # 48 MiB: safe under v7x's 64 MiB VMEM; working set at
            # tm=1024/tk=4096 (int8 A, lane-padded channels) is ~12-16 MiB.
            vmem_limit_bytes=48 * 1024 * 1024,
        ),
    )(blk_idx, blk_cnt, a_i8, x, x, wl, wr, inv_deg, *extra_params)


# --------------------------------------------------------------------------
# Parameters (raw f32 for reference, padded bf16 + folded BN for the kernels)
# --------------------------------------------------------------------------
def init_raw_params(key, in_channels, hidden_channels, out_channels,
                    num_layers):
    """Weights stored as [in, out] (kernel computes X @ W == torch x @ W.T)."""
    dims = ([in_channels] + [hidden_channels] * (num_layers - 1)
            + [out_channels])
    raw = []
    for li in range(num_layers):
        cin, cout = dims[li], dims[li + 1]
        key, k1, k2, k3 = jax.random.split(key, 4)
        s = 1.0 / jnp.sqrt(jnp.float32(cin))
        wl = jax.random.uniform(k1, (cin, cout), jnp.float32, -s, s)
        wr = jax.random.uniform(k2, (cin, cout), jnp.float32, -s, s)
        b = jax.random.uniform(k3, (cout,), jnp.float32, -s, s)
        raw.append((wl, wr, b))
    return raw


def prepare_kernel_params(raw_params):
    """Lane-pad all channel dims to 128 and fold bias + BN(eval) per layer."""
    eps = 1e-5
    num_layers = len(raw_params)
    params = []
    for li, (wl, wr, b) in enumerate(raw_params):
        cin, cout = wl.shape
        cin_p, cout_p = _round_up(cin, LANE), _round_up(cout, LANE)
        wl_p = jnp.zeros((cin_p, cout_p), jnp.float32).at[:cin, :cout].set(wl)
        wr_p = jnp.zeros((cin_p, cout_p), jnp.float32).at[:cin, :cout].set(wr)
        if li < num_layers - 1:
            # BatchNorm1d eval with fresh running stats (mean=0, var=1,
            # gamma=1, beta=0): scale = 1/sqrt(1+eps), shift = b*scale.
            # Pad lanes get scale=0/shift=0 -> relu(0) = 0, so padded hidden
            # channels stay exactly zero downstream.
            inv_std = 1.0 / jnp.sqrt(1.0 + eps)
            scale = jnp.zeros((1, cout_p), jnp.float32).at[0, :cout].set(inv_std)
            shift = jnp.zeros((1, cout_p), jnp.float32).at[0, :cout].set(
                b * inv_std)
            params.append({"wl": wl_p.astype(jnp.bfloat16),
                           "wr": wr_p.astype(jnp.bfloat16),
                           "scale": scale, "shift": shift})
        else:
            # Pad class lanes with -1e30 so they vanish under softmax.
            b_p = jnp.full((1, cout_p), -1e30, jnp.float32).at[0, :cout].set(b)
            params.append({"wl": wl_p.astype(jnp.bfloat16),
                           "wr": wr_p.astype(jnp.bfloat16),
                           "b": b_p})
    return params


# --------------------------------------------------------------------------
# Full forward
# --------------------------------------------------------------------------
def sage_forward(params, x, adj, out_channels, *,
                 tm_target=1024, tk_target=4096):
    num_nodes, in_ch = x.shape
    n_pad = _round_up(num_nodes, LANE)
    cin_pad = _round_up(in_ch, LANE)

    # int8 {0,1} adjacency, zero-padded to (n_pad, n_pad).
    adj_np = (np.asarray(adj) != 0)
    adj_pad = np.zeros((n_pad, n_pad), dtype=np.int8)
    adj_pad[:num_nodes, :num_nodes] = adj_np.astype(np.int8)

    # Exact 1/deg (mean aggregation); isolated / padded rows -> 0.
    deg = adj_pad.astype(np.float32).sum(axis=1, keepdims=True)
    inv_deg = np.where(deg > 0.0, 1.0 / np.maximum(deg, 1.0), 0.0)
    inv_deg = jnp.asarray(inv_deg.astype(np.float32))

    tm = _tile(n_pad, tm_target, LANE)
    tk = _tile(n_pad, tk_target, LANE)
    blk_idx, blk_cnt, max_nnz = build_block_schedule(adj_pad != 0, tm, tk)

    a_i8 = jnp.asarray(adj_pad)

    # Row/lane-padded bf16 features.
    h = jnp.zeros((n_pad, cin_pad), jnp.bfloat16)
    h = h.at[:num_nodes, :in_ch].set(x.astype(jnp.bfloat16))

    # TODO(synk): dropout is identity because the forward is implemented in
    # eval mode (training=False), matching F.dropout / BatchNorm1d inference.
    for layer in params[:-1]:
        h = _sage_layer_call(_sage_hidden_kernel,
                             (layer["scale"], layer["shift"]),
                             jnp.bfloat16,
                             a_i8, h, layer["wl"], layer["wr"], inv_deg,
                             blk_idx, blk_cnt, max_nnz, tm, tk)

    last = params[-1]
    logits = _sage_layer_call(_sage_final_kernel, (last["b"],),
                              jnp.float32,
                              a_i8, h, last["wl"], last["wr"], inv_deg,
                              blk_idx, blk_cnt, max_nnz, tm, tk)
    return logits[:num_nodes, :out_channels]


# --------------------------------------------------------------------------
# Pure-JAX f32 reference (same eval-mode semantics)
# --------------------------------------------------------------------------
def sage_reference(raw_params, x, adj):
    eps = 1e-5
    deg = jnp.sum(adj, axis=1, keepdims=True)
    a_norm = adj / jnp.maximum(deg, 1.0)
    h = x
    n_layers = len(raw_params)
    for li, (wl, wr, b) in enumerate(raw_params):
        agg = a_norm @ h
        out = agg @ wl + h @ wr + b
        if li < n_layers - 1:
            out = out / jnp.sqrt(1.0 + eps)   # BatchNorm1d eval (fresh stats)
            out = jnp.maximum(out, 0.0)
        h = out
    return jax.nn.log_softmax(h, axis=-1)


if __name__ == "__main__":
    key = jax.random.PRNGKey(0)

    # small synthetic graph
    num_nodes = 64
    in_channels = 16
    hidden_channels = 32
    out_channels = 8
    num_layers = 3
    dropout = 0.5  # unused in eval mode

    key, k_feat, k_adj, k_param = jax.random.split(key, 4)

    x = jax.random.normal(k_feat, (num_nodes, in_channels), jnp.float32)

    # random sparse-ish adjacency (~10% density)
    adj = (jax.random.uniform(k_adj, (num_nodes, num_nodes)) < 0.1)
    adj = adj.astype(jnp.float32)

    raw_params = init_raw_params(k_param, in_channels, hidden_channels,
                                 out_channels, num_layers)
    params = prepare_kernel_params(raw_params)

    out = sage_forward(params, x, adj, out_channels)
    out = jax.block_until_ready(out)

    assert out.shape == (num_nodes, out_channels)

    # rows of log_softmax output must exp-sum to 1
    row_sums = jnp.sum(jnp.exp(out.astype(jnp.float32)), axis=-1)
    assert bool(jnp.all(jnp.abs(row_sums - 1.0) < 1e-3))

    # compare against the f32 reference (bf16 weights/activations -> loose tol)
    ref = sage_reference(raw_params, x, adj)
    max_err = float(jnp.max(jnp.abs(out.astype(jnp.float32) - ref)))
    assert max_err < 0.1, f"max abs error vs reference: {max_err}"

    print("KERNEL_OK")
</pallas_src>

<mosaic_0001>
module attributes {stable_mosaic.version = 11 : i64} {
  func.func @_sage_hidden_kernel(%arg0: i32, %arg1: i32, %arg2: memref<1x1xi32, #tpu.memory_space<smem>>, %arg3: memref<1xi32, #tpu.memory_space<smem>>, %arg4: memref<128x128xi8, #tpu.memory_space<vmem>>, %arg5: memref<128x128xbf16, #tpu.memory_space<vmem>>, %arg6: memref<128x128xbf16, #tpu.memory_space<vmem>>, %arg7: memref<128x128xbf16, #tpu.memory_space<vmem>>, %arg8: memref<128x128xbf16, #tpu.memory_space<vmem>>, %arg9: memref<128x1xf32, #tpu.memory_space<vmem>>, %arg10: memref<1x128xf32, #tpu.memory_space<vmem>>, %arg11: memref<1x128xf32, #tpu.memory_space<vmem>>, %arg12: memref<128x128xbf16, #tpu.memory_space<vmem>>, %arg13: memref<128x128xf32, #tpu.memory_space<vmem>>) attributes {dimension_semantics = [#tpu.dimension_semantics<parallel>, #tpu.dimension_semantics<arbitrary>], iteration_bounds = array<i64: 1, 1>, scalar_prefetch = 2 : i64, scratch_operands = 1 : i64, tpu.core_type = #tpu.core_type<tc>, window_params = [{transform_indices = @transform_0, window_bounds = array<i64: 128, 128>}, {transform_indices = @transform_1, window_bounds = array<i64: 128, 128>}, {transform_indices = @transform_2, window_bounds = array<i64: 128, 128>}, {pipeline_mode = #tpu.pipeline_mode<synchronous>, transform_indices = @transform_3, window_bounds = array<i64: 128, 128>}, {pipeline_mode = #tpu.pipeline_mode<synchronous>, transform_indices = @transform_4, window_bounds = array<i64: 128, 128>}, {transform_indices = @transform_5, window_bounds = array<i64: 128, 1>}, {pipeline_mode = #tpu.pipeline_mode<synchronous>, transform_indices = @transform_6, window_bounds = array<i64: 1, 128>}, {pipeline_mode = #tpu.pipeline_mode<synchronous>, transform_indices = @transform_7, window_bounds = array<i64: 1, 128>}, {transform_indices = @transform_8, window_bounds = array<i64: 128, 128>}]} {
    %c0_i32 = arith.constant 0 : i32
    %0 = arith.cmpi eq, %arg1, %c0_i32 : i32
    %1 = arith.extui %0 : i1 to i32
    %c0_i32_0 = arith.constant 0 : i32
    %2 = arith.cmpi ne, %1, %c0_i32_0 : i32
    scf.if %2 {
      %cst = arith.constant 0.000000e+00 : f32
      %11 = vector.broadcast %cst : f32 to vector<128x128xf32>
      %c0 = arith.constant 0 : index
      %c0_4 = arith.constant 0 : index
      %12 = vector.load %arg13[%c0, %c0_4] : memref<128x128xf32, #tpu.memory_space<vmem>>, vector<128x128xf32>
      tpu.vector_store %arg13[%c0, %c0_4], %11 {strides = array<i32>} : memref<128x128xf32, #tpu.memory_space<vmem>>, vector<128x128xf32>,
    } else {
    }
    %3 = arith.index_cast %arg0 : i32 to index
    %4 = memref.load %arg3[%3] : memref<1xi32, #tpu.memory_space<smem>>
    %5 = arith.cmpi slt, %arg1, %4 : i32
    %6 = arith.extui %5 : i1 to i32
    %c0_i32_1 = arith.constant 0 : i32
    %7 = arith.cmpi ne, %6, %c0_i32_1 : i32
    scf.if %7 {
      %c0 = arith.constant 0 : index
      %c0_4 = arith.constant 0 : index
      %11 = vector.load %arg4[%c0, %c0_4] : memref<128x128xi8, #tpu.memory_space<vmem>>, vector<128x128xi8>
      %12 = arith.sitofp %11 : vector<128x128xi8> to vector<128x128xbf16>
      %c0_5 = arith.constant 0 : index
      %c0_6 = arith.constant 0 : index
      %13 = vector.load %arg13[%c0_5, %c0_6] : memref<128x128xf32, #tpu.memory_space<vmem>>, vector<128x128xf32>
      %c0_7 = arith.constant 0 : index
      %c0_8 = arith.constant 0 : index
      %14 = vector.load %arg5[%c0_7, %c0_8] : memref<128x128xbf16, #tpu.memory_space<vmem>>, vector<128x128xbf16>
      %cst = arith.constant dense<0.000000e+00> : vector<128x128xf32>
      %15 = tpu.matmul %12, %14, %cst {dimension_numbers = #tpu.dot_dimension_numbers<[1], [0], [0], [1], [0, 0, 1, 1], [], []>} : vector<128x128xbf16>, vector<128x128xbf16>, vector<128x128xf32> -> vector<128x128xf32>
      %16 = arith.addf %13, %15 : vector<128x128xf32>
      %c0_9 = arith.constant 0 : index
      %c0_10 = arith.constant 0 : index
      %17 = vector.load %arg13[%c0_9, %c0_10] : memref<128x128xf32, #tpu.memory_space<vmem>>, vector<128x128xf32>
      tpu.vector_store %arg13[%c0_9, %c0_10], %16 {strides = array<i32>} : memref<128x128xf32, #tpu.memory_space<vmem>>, vector<128x128xf32>,
    } else {
    }
    %c0_i32_2 = arith.constant 0 : i32
    %8 = arith.cmpi eq, %arg1, %c0_i32_2 : i32
    %9 = arith.extui %8 : i1 to i32
    %c0_i32_3 = arith.constant 0 : i32
    %10 = arith.cmpi ne, %9, %c0_i32_3 : i32
    scf.if %10 {
      %c0 = arith.constant 0 : index
      %c0_4 = arith.constant 0 : index
      %11 = vector.load %arg13[%c0, %c0_4] : memref<128x128xf32, #tpu.memory_space<vmem>>, vector<128x128xf32>
      %c0_5 = arith.constant 0 : index
      %c0_6 = arith.constant 0 : index
      %12 = vector.load %arg9[%c0_5, %c0_6] : memref<128x1xf32, #tpu.memory_space<vmem>>, vector<128x1xf32>
      %13 = vector.broadcast %12 : vector<128x1xf32> to vector<128x128xf32>
      %14 = arith.mulf %11, %13 : vector<128x128xf32>
      %15 = arith.truncf %14 : vector<128x128xf32> to vector<128x128xbf16>
      %c0_7 = arith.constant 0 : index
      %c0_8 = arith.constant 0 : index
      %16 = vector.load %arg7[%c0_7, %c0_8] : memref<128x128xbf16, #tpu.memory_space<vmem>>, vector<128x128xbf16>
      %cst = arith.constant dense<0.000000e+00> : vector<128x128xf32>
      %17 = tpu.matmul %15, %16, %cst {dimension_numbers = #tpu.dot_dimension_numbers<[1], [0], [0], [1], [0, 0, 1, 1], [], []>} : vector<128x128xbf16>, vector<128x128xbf16>, vector<128x128xf32> -> vector<128x128xf32>
      %c0_9 = arith.constant 0 : index
      %c0_10 = arith.constant 0 : index
      %18 = vector.load %arg6[%c0_9, %c0_10] : memref<128x128xbf16, #tpu.memory_space<vmem>>, vector<128x128xbf16>
      %c0_11 = arith.constant 0 : index
      %c0_12 = arith.constant 0 : index
      %19 = vector.load %arg8[%c0_11, %c0_12] : memref<128x128xbf16, #tpu.memory_space<vmem>>, vector<128x128xbf16>
      %cst_13 = arith.constant dense<0.000000e+00> : vector<128x128xf32>
      %20 = tpu.matmul %18, %19, %cst_13 {dimension_numbers = #tpu.dot_dimension_numbers<[1], [0], [0], [1], [0, 0, 1, 1], [], []>} : vector<128x128xbf16>, vector<128x128xbf16>, vector<128x128xf32> -> vector<128x128xf32>
      %21 = arith.addf %17, %20 : vector<128x128xf32>
      %c0_14 = arith.constant 0 : index
      %c0_15 = arith.constant 0 : index
      %22 = vector.load %arg10[%c0_14, %c0_15] : memref<1x128xf32, #tpu.memory_space<vmem>>, vector<1x128xf32>
      %23 = vector.broadcast %22 : vector<1x128xf32> to vector<128x128xf32>
      %24 = arith.mulf %21, %23 : vector<128x128xf32>
      %c0_16 = arith.constant 0 : index
      %c0_17 = arith.constant 0 : index
      %25 = vector.load %arg11[%c0_16, %c0_17] : memref<1x128xf32, #tpu.memory_space<vmem>>, vector<1x128xf32>
      %26 = vector.broadcast %25 : vector<1x128xf32> to vector<128x128xf32>
      %27 = arith.addf %24, %26 : vector<128x128xf32>
      %cst_18 = arith.constant 0.000000e+00 : f32
      %28 = vector.broadcast %cst_18 : f32 to vector<128x128xf32>
      %29 = arith.maximumf %27, %28 : vector<128x128xf32>
      %30 = arith.truncf %29 : vector<128x128xf32> to vector<128x128xbf16>
      %c0_19 = arith.constant 0 : index
      %c0_20 = arith.constant 0 : index
      %31 = vector.load %arg12[%c0_19, %c0_20] : memref<128x128xbf16, #tpu.memory_space<vmem>>, vector<128x128xbf16>
      tpu.vector_store %arg12[%c0_19, %c0_20], %30 {strides = array<i32>} : memref<128x128xbf16, #tpu.memory_space<vmem>>, vector<128x128xbf16>,
    } else {
    }
    return
  }
  func.func @transform_0(%arg0: i32, %arg1: i32, %arg2: memref<1x1xi32, #tpu.memory_space<smem>>, %arg3: memref<1xi32, #tpu.memory_space<smem>>) -> (i32, i32) {
    %0 = arith.index_cast %arg0 : i32 to index
    %1 = arith.index_cast %arg1 : i32 to index
    %2 = memref.load %arg2[%0, %1] : memref<1x1xi32, #tpu.memory_space<smem>>
    %c0_i32 = arith.constant 0 : i32
    return %arg0, %2 : i32, i32
  }
  func.func @transform_1(%arg0: i32, %arg1: i32, %arg2: memref<1x1xi32, #tpu.memory_space<smem>>, %arg3: memref<1xi32, #tpu.memory_space<smem>>) -> (i32, i32) {
    %0 = arith.index_cast %arg0 : i32 to index
    %1 = arith.index_cast %arg1 : i32 to index
    %2 = memref.load %arg2[%0, %1] : memref<1x1xi32, #tpu.memory_space<smem>>
    %c0_i32 = arith.constant 0 : i32
    %c0_i32_0 = arith.constant 0 : i32
    return %2, %c0_i32 : i32, i32
  }
  func.func @transform_2(%arg0: i32, %arg1: i32, %arg2: memref<1x1xi32, #tpu.memory_space<smem>>, %arg3: memref<1xi32, #tpu.memory_space<smem>>) -> (i32, i32) {
    %c0_i32 = arith.constant 0 : i32
    %c0_i32_0 = arith.constant 0 : i32
    return %arg0, %c0_i32 : i32, i32
  }
  func.func @transform_3(%arg0: i32, %arg1: i32, %arg2: memref<1x1xi32, #tpu.memory_space<smem>>, %arg3: memref<1xi32, #tpu.memory_space<smem>>) -> (i32, i32) {
    %c0_i32 = arith.constant 0 : i32
    %c0_i32_0 = arith.constant 0 : i32
    %c0_i32_1 = arith.constant 0 : i32
    return %c0_i32, %c0_i32_0 : i32, i32
  }
  func.func @transform_4(%arg0: i32, %arg1: i32, %arg2: memref<1x1xi32, #tpu.memory_space<smem>>, %arg3: memref<1xi32, #tpu.memory_space<smem>>) -> (i32, i32) {
    %c0_i32 = arith.constant 0 : i32
    %c0_i32_0 = arith.constant 0 : i32
    %c0_i32_1 = arith.constant 0 : i32
    return %c0_i32, %c0_i32_0 : i32, i32
  }
  func.func @transform_5(%arg0: i32, %arg1: i32, %arg2: memref<1x1xi32, #tpu.memory_space<smem>>, %arg3: memref<1xi32, #tpu.memory_space<smem>>) -> (i32, i32) {
    %c0_i32 = arith.constant 0 : i32
    %c0_i32_0 = arith.constant 0 : i32
    return %arg0, %c0_i32 : i32, i32
  }
  func.func @transform_6(%arg0: i32, %arg1: i32, %arg2: memref<1x1xi32, #tpu.memory_space<smem>>, %arg3: memref<1xi32, #tpu.memory_space<smem>>) -> (i32, i32) {
    %c0_i32 = arith.constant 0 : i32
    %c0_i32_0 = arith.constant 0 : i32
    %c0_i32_1 = arith.constant 0 : i32
    return %c0_i32, %c0_i32_0 : i32, i32
  }
  func.func @transform_7(%arg0: i32, %arg1: i32, %arg2: memref<1x1xi32, #tpu.memory_space<smem>>, %arg3: memref<1xi32, #tpu.memory_space<smem>>) -> (i32, i32) {
    %c0_i32 = arith.constant 0 : i32
    %c0_i32_0 = arith.constant 0 : i32
    %c0_i32_1 = arith.constant 0 : i32
    return %c0_i32, %c0_i32_0 : i32, i32
  }
  func.func @transform_8(%arg0: i32, %arg1: i32, %arg2: memref<1x1xi32, #tpu.memory_space<smem>>, %arg3: memref<1xi32, #tpu.memory_space<smem>>) -> (i32, i32) {
    %c0_i32 = arith.constant 0 : i32
    %c0_i32_0 = arith.constant 0 : i32
    return %arg0, %c0_i32 : i32, i32
  }
}

</mosaic_0001>

<llo_original>
// kernel: tpu_custom_call.1
$region0: #{tpu_custom_call.1}
  #allocation0 [shape = 'u32[]', space=smem, size = 0x4, offset = 0x4, fixed_abs, tag = 'smem constant byte address 0x4 - core index']
  #allocation1 [shape = 'u32[144,128]{1,0:T(1,128)}', space=vmem, size = 0x12000, scoped, tag = 'internal scratch']
  #allocation2 [shape = 'f32[128,128]{1,0:T(8,128)}', space=vmem, size = 0x10000, scoped, tag = 'scratch operand']
  #allocation3 [shape = 's32[1]{0}', space=sflag, size = 0x4, scoped, tag = 'scoped memory for tpu_custom_call.1']
  #allocation4 [shape = 's32[1,1]{1,0:T(1,128)S(6)}', space=smem, size = 0x200, scoped, tag = 'prefetched SMEM operand 0']
  #allocation5 [shape = 's32[1]{0:T(128)S(6)}', space=smem, size = 0x200, scoped, tag = 'prefetched SMEM operand 1']
  %s0 = inlined_call_operand.<no memory space> [shape: s32[1,1], index: 0, kind: input, shape index: {}]
  %s1 = inlined_call_operand.<no memory space> [shape: s32[1], index: 1, kind: input, shape index: {}]
  %s2 = inlined_call_operand.hbm [shape: s8[128,128], index: 2, kind: input, shape index: {}]
  %s3 = inlined_call_operand.vmem [shape: bf16[128,128], index: 3, kind: input, shape index: {}]
  %s4 = inlined_call_operand.vmem [shape: bf16[128,128], index: 4, kind: input, shape index: {}]
  %s5 = inlined_call_operand.hbm [shape: bf16[128,128], index: 5, kind: input, shape index: {}]
  %s6 = inlined_call_operand.hbm [shape: bf16[128,128], index: 6, kind: input, shape index: {}]
  %s7 = inlined_call_operand.vmem [shape: f32[128,1], index: 7, kind: input, shape index: {}]
  %s8 = inlined_call_operand.vmem [shape: f32[1,128], index: 8, kind: input, shape index: {}]
  %s9 = inlined_call_operand.vmem [shape: f32[1,128], index: 9, kind: input, shape index: {}]
  %s10 = inlined_call_operand.hbm [shape: bf16[128,128], index: 10, kind: output, shape index: {}]
  %s11 = sld [smem:[#allocation0]]
  $region66: #{tpu_custom_call.1} parent=0
    _
  %s13 = ssub.s32 1, %s11
  %s14 = scalar_select 0, %s13, %s11
  %15 = sst [smem:[#allocation4]] %s0
  %16 = sst [smem:[#allocation5]] %s1
  $region1: #{tpu_custom_call.1} parent=0
    #allocation6 [shape = 'u8[16384]{0}', space=vmem, size = 0x4000, scoped, tag = 'input window, operand 2, single buffered']
    #allocation7 [shape = 's32[1]{0}', space=sflag, size = 0x4, scoped, tag = 'scoped memory for tpu_custom_call.1']
    #allocation8 [shape = 's32[1]{0}', space=sflag, size = 0x4, scoped, tag = 'scoped memory for tpu_custom_call.1']
    #allocation9 [shape = 'u8[32768]{0}', space=vmem, size = 0x8000, scoped, tag = 'input window, operand 5, single buffered']
    #allocation10 [shape = 's32[1]{0}', space=sflag, size = 0x4, scoped, tag = 'scoped memory for tpu_custom_call.1']
    #allocation11 [shape = 'u8[32768]{0}', space=vmem, size = 0x8000, scoped, tag = 'input window, operand 6, single buffered']
    #allocation12 [shape = 'u8[32768]{0}', space=vmem, size = 0x8000, scoped, tag = 'output window, operand 0, single buffered']
    %17 = vsyncpa [#allocation7], 0
    %18 = vsyncpa [#allocation10], 0
    %19 = vsyncpa [#allocation8], 0
    // Predicated region
    $region2: #{tpu_custom_call.1} parent=1 // pred_check
      _
    $region3: #{tpu_custom_call.1} parent=1 // pred_check_branch
      %21 = sbr.rel (0) target = $region5
    $region4: #{tpu_custom_call.1} parent=1 // pred_region
      %s22 = sadd.s32 0, 0
      %s23 = smul.u32 %s22, 128
      %s24 = sadd.s32 %s23, 0
      %s25 = sld [smem:[#allocation4 + %s24]]
      %s27 = ssub.s32 512, 512
      %28 = vsyncadd [#allocation7], %s27
      %s29 = smul.addr %s25, 128
      %s30 = scalar_lea.hbm %s2, %s29
      %s31 = sshll.u32 [#allocation6], 4
      %s32 = int_to_ptr.vmem [resolvable:$true] %s31
      %37 = dma.hbm_to_vmem [thread:$0]  %s30, 512, %s32, [#allocation7], 128, 128, 8
    $region5: #{tpu_custom_call.1} parent=1 // pred_fallthru
      _
    // Predicated region
    $region6: #{tpu_custom_call.1} parent=1 // pred_check
      _
    $region7: #{tpu_custom_call.1} parent=1 // pred_check_branch
      %39 = sbr.rel (0) target = $region9
    $region8: #{tpu_custom_call.1} parent=1 // pred_region
      %s40 = sadd.s32 0, 0
      %s41 = smul.u32 %s40, 128
      %s42 = sadd.s32 %s41, 0
      %s43 = sld [smem:[#allocation4 + %s42]]
      %s44 = smul.u32 16, %s43
      %p45 = scmp.lt.s32.totalorder %s44, 15
      %s46 = scalar_select %p45, %s44, 15
      %s47 = smul.addr %s46, 4
      %s48 = scalar_lea.vmem %s3, %s47
      %s49 = sadd.s32 0, 0
      %s50 = smul.u32 %s49, 128
      %s51 = sadd.s32 %s50, 0
      %s52 = sld [smem:[#allocation4 + %s51]]
      %s53 = smul.u32 16, %s52
    $region9: #{tpu_custom_call.1} parent=1 // pred_fallthru
      _
    // Predicated region
    $region10: #{tpu_custom_call.1} parent=1 // pred_check
      _
    $region11: #{tpu_custom_call.1} parent=1 // pred_check_branch
      %55 = sbr.rel (0) target = $region13
    $region12: #{tpu_custom_call.1} parent=1 // pred_region
      _
    $region13: #{tpu_custom_call.1} parent=1 // pred_fallthru
      _
    // Predicated region
    $region14: #{tpu_custom_call.1} parent=1 // pred_check
      _
    $region15: #{tpu_custom_call.1} parent=1 // pred_check_branch
      %57 = sbr.rel (0) target = $region17
    $region16: #{tpu_custom_call.1} parent=1 // pred_region
      %s59 = ssub.s32 1024, 1024
      %60 = vsyncadd [#allocation10], %s59
      %s61 = sshll.u32 [#allocation9], 4
      %s62 = int_to_ptr.vmem [resolvable:$true] %s61
      %67 = dma.hbm_to_vmem [thread:$0]  %s5, 1024, %s62, [#allocation10], 64, 64, 4
    $region17: #{tpu_custom_call.1} parent=1 // pred_fallthru
      _
    // Predicated region
    $region18: #{tpu_custom_call.1} parent=1 // pred_check
      _
    $region19: #{tpu_custom_call.1} parent=1 // pred_check_branch
      %69 = sbr.rel (0) target = $region21
    $region20: #{tpu_custom_call.1} parent=1 // pred_region
      %s71 = ssub.s32 1024, 1024
      %72 = vsyncadd [#allocation10], %s71
      %s73 = sshll.u32 [#allocation11], 4
      %s74 = int_to_ptr.vmem [resolvable:$true] %s73
      %79 = dma.hbm_to_vmem [thread:$0]  %s6, 1024, %s74, [#allocation10], 64, 64, 4
    $region21: #{tpu_custom_call.1} parent=1 // pred_fallthru
      _
    // Predicated region
    $region22: #{tpu_custom_call.1} parent=1 // pred_check
      _
    $region23: #{tpu_custom_call.1} parent=1 // pred_check_branch
      %81 = sbr.rel (0) target = $region25
    $region24: #{tpu_custom_call.1} parent=1 // pred_region
      _
    $region25: #{tpu_custom_call.1} parent=1 // pred_fallthru
      _
    // Predicated region
    $region26: #{tpu_custom_call.1} parent=1 // pred_check
      _
    $region27: #{tpu_custom_call.1} parent=1 // pred_check_branch
      %83 = sbr.rel (0) target = $region29
    $region28: #{tpu_custom_call.1} parent=1 // pred_region
      _
    $region29: #{tpu_custom_call.1} parent=1 // pred_fallthru
      _
    // Predicated region
    $region30: #{tpu_custom_call.1} parent=1 // pred_check
      _
    $region31: #{tpu_custom_call.1} parent=1 // pred_check_branch
      %85 = sbr.rel (0) target = $region33
    $region32: #{tpu_custom_call.1} parent=1 // pred_region
      _
    $region33: #{tpu_custom_call.1} parent=1 // pred_fallthru
      _
    // Predicated region
    $region34: #{tpu_custom_call.1} parent=1 // pred_check
      _
    $region35: #{tpu_custom_call.1} parent=1 // pred_check_branch
      %87 = sbr.rel (0) target = $region37
    $region36: #{tpu_custom_call.1} parent=1 // pred_region
      %88 = dma.done [#allocation7], 512
    $region37: #{tpu_custom_call.1} parent=1 // pred_fallthru
      _
    // Predicated region
    $region38: #{tpu_custom_call.1} parent=1 // pred_check
      _
    $region39: #{tpu_custom_call.1} parent=1 // pred_check_branch
      %90 = sbr.rel (0) target = $region41
    $region40: #{tpu_custom_call.1} parent=1 // pred_region
      %91 = dma.done [#allocation10], 1024
    $region41: #{tpu_custom_call.1} parent=1 // pred_fallthru
      _
    // Predicated region
    $region42: #{tpu_custom_call.1} parent=1 // pred_check
      _
    $region43: #{tpu_custom_call.1} parent=1 // pred_check_branch
      %93 = sbr.rel (0) target = $region45
    $region44: #{tpu_custom_call.1} parent=1 // pred_region
      %94 = dma.done [#allocation10], 1024
    $region45: #{tpu_custom_call.1} parent=1 // pred_fallthru
      _
    %s95 = sadd.s32 0, 0
    %s96 = smul.u32 %s95, 128
    %s97 = sadd.s32 %s96, 0
    %s98 = sld [smem:[#allocation4 + %s97]]
    %s99 = smul.u32 16, %s98
    %p100 = scmp.lt.s32.totalorder %s99, 15
    %s101 = scalar_select %p100, %s99, 15
    %s102 = smul.addr %s101, 4
    %s103 = scalar_lea.vmem %s3, %s102
    %s104 = sadd.s32 0, 0
    %s105 = smul.u32 %s104, 128
    %s106 = sadd.s32 %s105, 0
    %s107 = sld [smem:[#allocation4 + %s106]]
    %s108 = sadd.s32 0, 0
    %s109 = smul.u32 %s108, 128
    %s110 = sadd.s32 %s109, 0
    %s111 = sld [smem:[#allocation4 + %s110]]
    %s112 = smul.u32 16, %s111
    %p113 = scmp.lt.s32.totalorder %s112, 15
    %s114 = scalar_select %p113, %s112, 15
    %s115 = smul.addr %s114, 4
    %s116 = scalar_lea.vmem %s3, %s115
    %s117 = sadd.s32 0, 0
    %s118 = smul.u32 %s117, 128
    %s119 = sadd.s32 %s118, 0
    %s120 = sld [smem:[#allocation4 + %s119]]
    %s121 = smul.u32 16, %s120
    %p123 = scmp.eq.s32.totalorder 0, 0
    // Predicated region
    $region46: #{tpu_custom_call.1} parent=1 // pred_check
      %p124 = pneg %p123
    $region47: #{tpu_custom_call.1} parent=1 // pred_check_branch
      %126 = sbr.rel (%p124) target = $region49
    $region48: #{tpu_custom_call.1} parent=1 // pred_region
      %127 = vst [vmem:[#allocation2] sm:$0xff] 0.0
      %128 = vst [vmem:[#allocation2 + $0x8] sm:$0xff] 0.0
      %129 = vst [vmem:[#allocation2 + $0x10] sm:$0xff] 0.0
      %130 = vst [vmem:[#allocation2 + $0x18] sm:$0xff] 0.0
      %131 = vst [vmem:[#allocation2 + $0x20] sm:$0xff] 0.0
      %132 = vst [vmem:[#allocation2 + $0x28] sm:$0xff] 0.0
      %133 = vst [vmem:[#allocation2 + $0x30] sm:$0xff] 0.0
      %134 = vst [vmem:[#allocation2 + $0x38] sm:$0xff] 0.0
      %135 = vst [vmem:[#allocation2 + $0x40] sm:$0xff] 0.0
      %136 = vst [vmem:[#allocation2 + $0x48] sm:$0xff] 0.0
      %137 = vst [vmem:[#allocation2 + $0x50] sm:$0xff] 0.0
      %138 = vst [vmem:[#allocation2 + $0x58] sm:$0xff] 0.0
      %139 = vst [vmem:[#allocation2 + $0x60] sm:$0xff] 0.0
      %140 = vst [vmem:[#allocation2 + $0x68] sm:$0xff] 0.0
      %141 = vst [vmem:[#allocation2 + $0x70] sm:$0xff] 0.0
      %142 = vst [vmem:[#allocation2 + $0x78] sm:$0xff] 0.0
    $region49: #{tpu_custom_call.1} parent=1 // pred_fallthru
      _
    %s143 = sld [smem:[#allocation5]]
    %p144 = scmp.lt.s32.totalorder 0, %s143
    // Predicated region
    $region50: #{tpu_custom_call.1} parent=1 // pred_check
      %p145 = pneg %p144
    $region51: #{tpu_custom_call.1} parent=1 // pred_check_branch
      %147 = sbr.rel (%p145) target = $region53
    $region52: #{tpu_custom_call.1} parent=1 // pred_region
      %v148 = vld [vmem:[#allocation6] sm:$0xff]
      %v149 = vld [vmem:[#allocation6 + $0x8] sm:$0xff]
      %v150 = vld [vmem:[#allocation6 + $0x10] sm:$0xff]
      %v151 = vld [vmem:[#allocation6 + $0x18] sm:$0xff]
      %v152 = vunpack.c.l.s8.bf16 %v148
      %v153 = vunpack.c.h.s8.bf16 %v148
      %v154 = vunpack.c.l.s8.bf16 %v149
      %v155 = vunpack.c.h.s8.bf16 %v149
      %v156 = vunpack.c.l.s8.bf16 %v150
      %v157 = vunpack.c.h.s8.bf16 %v150
      %v158 = vunpack.c.l.s8.bf16 %v151
      %v159 = vunpack.c.h.s8.bf16 %v151
      %v160 = vld [vmem:[#allocation2] sm:$0xff]
      %v161 = vld [vmem:[#allocation2 + $0x8] sm:$0xff]
      %v162 = vld [vmem:[#allocation2 + $0x10] sm:$0xff]
      %v163 = vld [vmem:[#allocation2 + $0x18] sm:$0xff]
      %v164 = vld [vmem:[#allocation2 + $0x20] sm:$0xff]
      %v165 = vld [vmem:[#allocation2 + $0x28] sm:$0xff]
      %v166 = vld [vmem:[#allocation2 + $0x30] sm:$0xff]
      %v167 = vld [vmem:[#allocation2 + $0x38] sm:$0xff]
      %v168 = vld [vmem:[#allocation2 + $0x40] sm:$0xff]
      %v169 = vld [vmem:[#allocation2 + $0x48] sm:$0xff]
      %v170 = vld [vmem:[#allocation2 + $0x50] sm:$0xff]
      %v171 = vld [vmem:[#allocation2 + $0x58] sm:$0xff]
      %v172 = vld [vmem:[#allocation2 + $0x60] sm:$0xff]
      %v173 = vld [vmem:[#allocation2 + $0x68] sm:$0xff]
      %v174 = vld [vmem:[#allocation2 + $0x70] sm:$0xff]
      %v175 = vld [vmem:[#allocation2 + $0x78] sm:$0xff]
      %v176 = vld [vmem:[%s116] sm:$0xf]
      %v177 = vld [vmem:[%s116 + $0x4] sm:$0xf]
      %v178 = vld [vmem:[%s116 + $0x8] sm:$0xf]
      %v179 = vld [vmem:[%s116 + $0xc] sm:$0xf]
      %v180 = vld [vmem:[%s116 + $0x10] sm:$0xf]
      %v181 = vld [vmem:[%s116 + $0x14] sm:$0xf]
      %v182 = vld [vmem:[%s116 + $0x18] sm:$0xf]
      %v183 = vld [vmem:[%s116 + $0x1c] sm:$0xf]
      %v184 = vld [vmem:[%s116 + $0x20] sm:$0xf]
      %v185 = vld [vmem:[%s116 + $0x24] sm:$0xf]
      %v186 = vld [vmem:[%s116 + $0x28] sm:$0xf]
      %v187 = vld [vmem:[%s116 + $0x2c] sm:$0xf]
      %v188 = vld [vmem:[%s116 + $0x30] sm:$0xf]
      %v189 = vld [vmem:[%s116 + $0x34] sm:$0xf]
      %v190 = vld [vmem:[%s116 + $0x38] sm:$0xf]
      %v191 = vld [vmem:[%s116 + $0x3c] sm:$0xf]
      %v208 = vunpack.c.l.b16 %v176
      %v209 = vunpack.c.l.b16 %v177
      %v210 = vunpack.c.l.b16 %v178
      %v211 = vunpack.c.l.b16 %v179
      %v212 = vunpack.c.l.b16 %v180
      %v213 = vunpack.c.l.b16 %v181
      %v214 = vunpack.c.l.b16 %v182
      %v215 = vunpack.c.l.b16 %v183
      %v216 = vunpack.c.l.b16 %v184
      %v217 = vunpack.c.l.b16 %v185
      %v218 = vunpack.c.l.b16 %v186
      %v219 = vunpack.c.l.b16 %v187
      %v220 = vunpack.c.l.b16 %v188
      %v221 = vunpack.c.l.b16 %v189
      %v222 = vunpack.c.l.b16 %v190
      %v223 = vunpack.c.l.b16 %v191
      %v224 = vpack.c.b16 %v209, %v208
      %v225 = vpack.c.b16 %v211, %v210
      %v226 = vpack.c.b16 %v213, %v212
      %v227 = vpack.c.b16 %v215, %v214
      %v228 = vpack.c.b16 %v217, %v216
      %v229 = vpack.c.b16 %v219, %v218
      %v230 = vpack.c.b16 %v221, %v220
      %v231 = vpack.c.b16 %v223, %v222
      %240 = vmatprep.subr.bf16.mxu0 0
      %241 = vmatpush1.bf16.msra.mxu0 %v231
      %242 = vmatprep.subr.bf16.mxu0 0
      %243 = vmatpush1.bf16.msra.mxu0 %v230
      %244 = vmatprep.subr.bf16.mxu0 0
      %245 = vmatpush1.bf16.msra.mxu0 %v229
      %246 = vmatprep.subr.bf16.mxu0 0
      %247 = vmatpush1.bf16.msra.mxu0 %v228
      %248 = vmatprep.subr.bf16.mxu0 0
      %249 = vmatpush1.bf16.msra.mxu0 %v227
      %250 = vmatprep.subr.bf16.mxu0 0
      %251 = vmatpush1.bf16.msra.mxu0 %v226
      %252 = vmatprep.subr.bf16.mxu0 0
      %253 = vmatpush1.bf16.msra.mxu0 %v225
      %254 = vmatprep.subr.bf16.mxu0 0
      %255 = vmatpush1.bf16.msra.mxu0 %v224
      %256 = vmatprep.subr.bf16.mxu0 0
      %257 = vmatpush2.bf16.msra.mxu0 0
      %258 = vmatprep.subr.bf16.mxu0 0
      %259 = vmatpush2.bf16.msra.mxu0 0
      %260 = vmatprep.subr.bf16.mxu0 0
      %261 = vmatpush2.bf16.msra.mxu0 0
      %262 = vmatprep.subr.bf16.mxu0 0
      %263 = vmatpush2.bf16.msra.mxu0 0
      %264 = vmatprep.subr.bf16.mxu0 0
      %265 = vmatpush2.bf16.msra.mxu0 0
      %266 = vmatprep.subr.bf16.mxu0 0
      %267 = vmatpush2.bf16.msra.mxu0 0
      %268 = vmatprep.subr.bf16.mxu0 0
      %269 = vmatpush2.bf16.msra.mxu0 0
      %270 = vmatprep.subr.bf16.mxu0 0
      %271 = vmatpush2.bf16.msra.mxu0 0
      %272 = vmatprep.mubr.bf16.mxu0 0
      %273 = vmatmul.mubr.bf16.gmra.mxu0 %v152
      %v274 = vpop.f32.mrf.mxu0
      %v275 = vadd.f32 0.0, %v274
      %v276 = vpop.f32.mrf.mxu0
      %v277 = vpop.f32.mrf.mxu0
      %v278 = vadd.f32 0.0, %v277
      %v279 = vpop.f32.mrf.mxu0
      %280 = vmatprep.mubr.bf16.mxu0 0
      %281 = vmatmul.mubr.bf16.gmra.mxu0 %v153
      %v282 = vpop.f32.mrf.mxu0
      %v283 = vadd.f32 0.0, %v282
      %v284 = vpop.f32.mrf.mxu0
      %v285 = vpop.f32.mrf.mxu0
      %v286 = vadd.f32 0.0, %v285
      %v287 = vpop.f32.mrf.mxu0
      %288 = vmatprep.mubr.bf16.mxu0 0
      %289 = vmatmul.mubr.bf16.gmra.mxu0 %v154
      %v290 = vpop.f32.mrf.mxu0
      %v291 = vadd.f32 0.0, %v290
      %v292 = vpop.f32.mrf.mxu0
      %v293 = vpop.f32.mrf.mxu0
      %v294 = vadd.f32 0.0, %v293
      %v295 = vpop.f32.mrf.mxu0
      %296 = vmatprep.mubr.bf16.mxu0 0
      %297 = vmatmul.mubr.bf16.gmra.mxu0 %v155
      %v298 = vpop.f32.mrf.mxu0
      %v299 = vadd.f32 0.0, %v298
      %v300 = vpop.f32.mrf.mxu0
      %v301 = vpop.f32.mrf.mxu0
      %v302 = vadd.f32 0.0, %v301
      %v303 = vpop.f32.mrf.mxu0
      %304 = vmatprep.mubr.bf16.mxu0 0
      %305 = vmatmul.mubr.bf16.gmra.mxu0 %v156
      %v306 = vpop.f32.mrf.mxu0
      %v307 = vadd.f32 0.0, %v306
      %v308 = vpop.f32.mrf.mxu0
      %v309 = vpop.f32.mrf.mxu0
      %v310 = vadd.f32 0.0, %v309
      %v311 = vpop.f32.mrf.mxu0
      %312 = vmatprep.mubr.bf16.mxu0 0
      %313 = vmatmul.mubr.bf16.gmra.mxu0 %v157
      %v314 = vpop.f32.mrf.mxu0
      %v315 = vadd.f32 0.0, %v314
      %v316 = vpop.f32.mrf.mxu0
      %v317 = vpop.f32.mrf.mxu0
      %v318 = vadd.f32 0.0, %v317
      %v319 = vpop.f32.mrf.mxu0
      %320 = vmatprep.mubr.bf16.mxu0 0
      %321 = vmatmul.mubr.bf16.gmra.mxu0 %v158
      %v322 = vpop.f32.mrf.mxu0
      %v323 = vadd.f32 0.0, %v322
      %v324 = vpop.f32.mrf.mxu0
      %v325 = vpop.f32.mrf.mxu0
      %v326 = vadd.f32 0.0, %v325
      %v327 = vpop.f32.mrf.mxu0
      %328 = vmatprep.mubr.bf16.mxu0 0
      %329 = vmatmul.mubr.bf16.gmra.mxu0 %v159
      %v330 = vpop.f32.mrf.mxu0
      %v331 = vadd.f32 0.0, %v330
      %v332 = vpop.f32.mrf.mxu0
      %v333 = vpop.f32.mrf.mxu0
      %v334 = vadd.f32 0.0, %v333
      %v335 = vpop.f32.mrf.mxu0
      %336 = vdwg.mxu0
      %v337 = vadd.f32 %v160, %v275
      %v338 = vadd.f32 %v161, %v278
      %v339 = vadd.f32 %v162, %v283
      %v340 = vadd.f32 %v163, %v286
      %v341 = vadd.f32 %v164, %v291
      %v342 = vadd.f32 %v165, %v294
      %v343 = vadd.f32 %v166, %v299
      %v344 = vadd.f32 %v167, %v302
      %v345 = vadd.f32 %v168, %v307
      %v346 = vadd.f32 %v169, %v310
      %v347 = vadd.f32 %v170, %v315
      %v348 = vadd.f32 %v171, %v318
      %v349 = vadd.f32 %v172, %v323
      %v350 = vadd.f32 %v173, %v326
      %v351 = vadd.f32 %v174, %v331
      %v352 = vadd.f32 %v175, %v334
      %353 = vst [vmem:[#allocation2] sm:$0xff] %v337
      %354 = vst [vmem:[#allocation2 + $0x8] sm:$0xff] %v338
      %355 = vst [vmem:[#allocation2 + $0x10] sm:$0xff] %v339
      %356 = vst [vmem:[#allocation2 + $0x18] sm:$0xff] %v340
      %357 = vst [vmem:[#allocation2 + $0x20] sm:$0xff] %v341
      %358 = vst [vmem:[#allocation2 + $0x28] sm:$0xff] %v342
      %359 = vst [vmem:[#allocation2 + $0x30] sm:$0xff] %v343
      %360 = vst [vmem:[#allocation2 + $0x38] sm:$0xff] %v344
      %361 = vst [vmem:[#allocation2 + $0x40] sm:$0xff] %v345
      %362 = vst [vmem:[#allocation2 + $0x48] sm:$0xff] %v346
      %363 = vst [vmem:[#allocation2 + $0x50] sm:$0xff] %v347
      %364 = vst [vmem:[#allocation2 + $0x58] sm:$0xff] %v348
      %365 = vst [vmem:[#allocation2 + $0x60] sm:$0xff] %v349
      %366 = vst [vmem:[#allocation2 + $0x68] sm:$0xff] %v350
      %367 = vst [vmem:[#allocation2 + $0x70] sm:$0xff] %v351
      %368 = vst [vmem:[#allocation2 + $0x78] sm:$0xff] %v352
    $region53: #{tpu_custom_call.1} parent=1 // pred_fallthru
      _
    // Predicated region
    $region54: #{tpu_custom_call.1} parent=1 // pred_check
      %p369 = pneg %p123
    $region55: #{tpu_custom_call.1} parent=1 // pred_check_branch
      %371 = sbr.rel (%p369) target = $region57
    $region56: #{tpu_custom_call.1} parent=1 // pred_region
      %v372 = vld [vmem:[#allocation2] sm:$0xff]
      %v373 = vld [vmem:[#allocation2 + $0x8] sm:$0xff]
      %v374 = vld [vmem:[#allocation2 + $0x10] sm:$0xff]
      %v375 = vld [vmem:[#allocation2 + $0x18] sm:$0xff]
      %v376 = vld [vmem:[#allocation2 + $0x20] sm:$0xff]
      %v377 = vld [vmem:[#allocation2 + $0x28] sm:$0xff]
      %v378 = vld [vmem:[#allocation2 + $0x30] sm:$0xff]
      %v379 = vld [vmem:[#allocation2 + $0x38] sm:$0xff]
      %v380 = vld [vmem:[#allocation2 + $0x40] sm:$0xff]
      %v381 = vld [vmem:[#allocation2 + $0x48] sm:$0xff]
      %v382 = vld [vmem:[#allocation2 + $0x50] sm:$0xff]
      %v383 = vld [vmem:[#allocation2 + $0x58] sm:$0xff]
      %v384 = vld [vmem:[#allocation2 + $0x60] sm:$0xff]
      %v385 = vld [vmem:[#allocation2 + $0x68] sm:$0xff]
      %v386 = vld [vmem:[#allocation2 + $0x70] sm:$0xff]
      %v387 = vld [vmem:[#allocation2 + $0x78] sm:$0xff]
      %v388 = vld [vmem:[%s7] sm:$0xff]
      %v389 = vld [vmem:[%s7 + $0x8] sm:$0xff]
      %v390 = vld [vmem:[%s7 + $0x10] sm:$0xff]
      %v391 = vld [vmem:[%s7 + $0x18] sm:$0xff]
      %v392 = vld [vmem:[%s7 + $0x20] sm:$0xff]
      %v393 = vld [vmem:[%s7 + $0x28] sm:$0xff]
      %v394 = vld [vmem:[%s7 + $0x30] sm:$0xff]
      %v395 = vld [vmem:[%s7 + $0x38] sm:$0xff]
      %v396 = vld [vmem:[%s7 + $0x40] sm:$0xff]
      %v397 = vld [vmem:[%s7 + $0x48] sm:$0xff]
      %v398 = vld [vmem:[%s7 + $0x50] sm:$0xff]
      %v399 = vld [vmem:[%s7 + $0x58] sm:$0xff]
      %v400 = vld [vmem:[%s7 + $0x60] sm:$0xff]
      %v401 = vld [vmem:[%s7 + $0x68] sm:$0xff]
      %v402 = vld [vmem:[%s7 + $0x70] sm:$0xff]
      %v403 = vld [vmem:[%s7 + $0x78] sm:$0xff]
      %405 = vset.pattern.permute.xlu0 0
      %406 = vperm.xlu0 %405, %v388
      %v407 = vpop.permute.xlu0 %406
      %410 = vset.pattern.permute.xlu0 0
      %411 = vperm.xlu0 %410, %v389
      %v412 = vpop.permute.xlu0 %411
      %415 = vset.pattern.permute.xlu0 0
      %416 = vperm.xlu0 %415, %v390
      %v417 = vpop.permute.xlu0 %416
      %420 = vset.pattern.permute.xlu0 0
      %421 = vperm.xlu0 %420, %v391
      %v422 = vpop.permute.xlu0 %421
      %425 = vset.pattern.permute.xlu0 0
      %426 = vperm.xlu0 %425, %v392
      %v427 = vpop.permute.xlu0 %426
      %430 = vset.pattern.permute.xlu0 0
      %431 = vperm.xlu0 %430, %v393
      %v432 = vpop.permute.xlu0 %431
      %435 = vset.pattern.permute.xlu0 0
      %436 = vperm.xlu0 %435, %v394
      %v437 = vpop.permute.xlu0 %436
      %440 = vset.pattern.permute.xlu0 0
      %441 = vperm.xlu0 %440, %v395
      %v442 = vpop.permute.xlu0 %441
      %445 = vset.pattern.permute.xlu0 0
      %446 = vperm.xlu0 %445, %v396
      %v447 = vpop.permute.xlu0 %446
      %450 = vset.pattern.permute.xlu0 0
      %451 = vperm.xlu0 %450, %v397
      %v452 = vpop.permute.xlu0 %451
      %455 = vset.pattern.permute.xlu0 0
      %456 = vperm.xlu0 %455, %v398
      %v457 = vpop.permute.xlu0 %456
      %460 = vset.pattern.permute.xlu0 0
      %461 = vperm.xlu0 %460, %v399
      %v462 = vpop.permute.xlu0 %461
      %465 = vset.pattern.permute.xlu0 0
      %466 = vperm.xlu0 %465, %v400
      %v467 = vpop.permute.xlu0 %466
      %470 = vset.pattern.permute.xlu0 0
      %471 = vperm.xlu0 %470, %v401
      %v472 = vpop.permute.xlu0 %471
      %475 = vset.pattern.permute.xlu0 0
      %476 = vperm.xlu0 %475, %v402
      %v477 = vpop.permute.xlu0 %476
      %480 = vset.pattern.permute.xlu0 0
      %481 = vperm.xlu0 %480, %v403
      %v482 = vpop.permute.xlu0 %481
      %v484 = vmul.f32 %v372, %v407
      %v485 = vmul.f32 %v373, %v412
      %v486 = vmul.f32 %v374, %v417
      %v487 = vmul.f32 %v375, %v422
      %v488 = vmul.f32 %v376, %v427
      %v489 = vmul.f32 %v377, %v432
      %v490 = vmul.f32 %v378, %v437
      %v491 = vmul.f32 %v379, %v442
      %v492 = vmul.f32 %v380, %v447
      %v493 = vmul.f32 %v381, %v452
      %v494 = vmul.f32 %v382, %v457
      %v495 = vmul.f32 %v383, %v462
      %v496 = vmul.f32 %v384, %v467
      %v497 = vmul.f32 %v385, %v472
      %v498 = vmul.f32 %v386, %v477
      %v499 = vmul.f32 %v387, %v482
      %v500 = vpack.c.bf16 %v485, %v484
      %v501 = vpack.c.bf16 %v487, %v486
      %v502 = vpack.c.bf16 %v489, %v488
      %v503 = vpack.c.bf16 %v491, %v490
      %v504 = vpack.c.bf16 %v493, %v492
      %v505 = vpack.c.bf16 %v495, %v494
      %v506 = vpack.c.bf16 %v497, %v496
      %v507 = vpack.c.bf16 %v499, %v498
      %v508 = vld [vmem:[#allocation9] sm:$0xf]
      %v509 = vld [vmem:[#allocation9 + $0x4] sm:$0xf]
      %v510 = vld [vmem:[#allocation9 + $0x8] sm:$0xf]
      %v511 = vld [vmem:[#allocation9 + $0xc] sm:$0xf]
      %v512 = vld [vmem:[#allocation9 + $0x10] sm:$0xf]
      %v513 = vld [vmem:[#allocation9 + $0x14] sm:$0xf]
      %v514 = vld [vmem:[#allocation9 + $0x18] sm:$0xf]
      %v515 = vld [vmem:[#allocation9 + $0x1c] sm:$0xf]
      %v516 = vld [vmem:[#allocation9 + $0x20] sm:$0xf]
      %v517 = vld [vmem:[#allocation9 + $0x24] sm:$0xf]
      %v518 = vld [vmem:[#allocation9 + $0x28] sm:$0xf]
      %v519 = vld [vmem:[#allocation9 + $0x2c] sm:$0xf]
      %v520 = vld [vmem:[#allocation9 + $0x30] sm:$0xf]
      %v521 = vld [vmem:[#allocation9 + $0x34] sm:$0xf]
      %v522 = vld [vmem:[#allocation9 + $0x38] sm:$0xf]
      %v523 = vld [vmem:[#allocation9 + $0x3c] sm:$0xf]
      %v524 = vld [vmem:[%s4] sm:$0xf]
      %v525 = vld [vmem:[%s4 + $0x4] sm:$0xf]
      %v526 = vld [vmem:[%s4 + $0x8] sm:$0xf]
      %v527 = vld [vmem:[%s4 + $0xc] sm:$0xf]
      %v528 = vld [vmem:[%s4 + $0x10] sm:$0xf]
      %v529 = vld [vmem:[%s4 + $0x14] sm:$0xf]
      %v530 = vld [vmem:[%s4 + $0x18] sm:$0xf]
      %v531 = vld [vmem:[%s4 + $0x1c] sm:$0xf]
      %v532 = vld [vmem:[%s4 + $0x20] sm:$0xf]
      %v533 = vld [vmem:[%s4 + $0x24] sm:$0xf]
      %v534 = vld [vmem:[%s4 + $0x28] sm:$0xf]
      %v535 = vld [vmem:[%s4 + $0x2c] sm:$0xf]
      %v536 = vld [vmem:[%s4 + $0x30] sm:$0xf]
      %v537 = vld [vmem:[%s4 + $0x34] sm:$0xf]
      %v538 = vld [vmem:[%s4 + $0x38] sm:$0xf]
      %v539 = vld [vmem:[%s4 + $0x3c] sm:$0xf]
      %v540 = vld [vmem:[#allocation11] sm:$0xf]
      %v541 = vld [vmem:[#allocation11 + $0x4] sm:$0xf]
      %v542 = vld [vmem:[#allocation11 + $0x8] sm:$0xf]
      %v543 = vld [vmem:[#allocation11 + $0xc] sm:$0xf]
      %v544 = vld [vmem:[#allocation11 + $0x10] sm:$0xf]
      %v545 = vld [vmem:[#allocation11 + $0x14] sm:$0xf]
      %v546 = vld [vmem:[#allocation11 + $0x18] sm:$0xf]
      %v547 = vld [vmem:[#allocation11 + $0x1c] sm:$0xf]
      %v548 = vld [vmem:[#allocation11 + $0x20] sm:$0xf]
      %v549 = vld [vmem:[#allocation11 + $0x24] sm:$0xf]
      %v550 = vld [vmem:[#allocation11 + $0x28] sm:$0xf]
      %v551 = vld [vmem:[#allocation11 + $0x2c] sm:$0xf]
      %v552 = vld [vmem:[#allocation11 + $0x30] sm:$0xf]
      %v553 = vld [vmem:[#allocation11 + $0x34] sm:$0xf]
      %v554 = vld [vmem:[#allocation11 + $0x38] sm:$0xf]
      %v555 = vld [vmem:[#allocation11 + $0x3c] sm:$0xf]
      %v572 = vunpack.c.l.b16 %v524
      %v573 = vunpack.c.l.b16 %v525
      %v574 = vunpack.c.l.b16 %v526
      %v575 = vunpack.c.l.b16 %v527
      %v576 = vunpack.c.l.b16 %v528
      %v577 = vunpack.c.l.b16 %v529
      %v578 = vunpack.c.l.b16 %v530
      %v579 = vunpack.c.l.b16 %v531
      %v580 = vunpack.c.l.b16 %v532
      %v581 = vunpack.c.l.b16 %v533
      %v582 = vunpack.c.l.b16 %v534
      %v583 = vunpack.c.l.b16 %v535
      %v584 = vunpack.c.l.b16 %v536
      %v585 = vunpack.c.l.b16 %v537
      %v586 = vunpack.c.l.b16 %v538
      %v587 = vunpack.c.l.b16 %v539
      %v588 = vpack.c.b16 %v573, %v572
      %v589 = vpack.c.b16 %v575, %v574
      %v590 = vpack.c.b16 %v577, %v576
      %v591 = vpack.c.b16 %v579, %v578
      %v592 = vpack.c.b16 %v581, %v580
      %v593 = vpack.c.b16 %v583, %v582
      %v594 = vpack.c.b16 %v585, %v584
      %v595 = vpack.c.b16 %v587, %v586
      %v620 = vunpack.c.l.b16 %v540
      %v621 = vunpack.c.l.b16 %v541
      %v622 = vunpack.c.l.b16 %v542
      %v623 = vunpack.c.l.b16 %v543
      %v624 = vunpack.c.l.b16 %v544
      %v625 = vunpack.c.l.b16 %v545
      %v626 = vunpack.c.l.b16 %v546
      %v627 = vunpack.c.l.b16 %v547
      %v628 = vunpack.c.l.b16 %v548
      %v629 = vunpack.c.l.b16 %v549
      %v630 = vunpack.c.l.b16 %v550
      %v631 = vunpack.c.l.b16 %v551
      %v632 = vunpack.c.l.b16 %v552
      %v633 = vunpack.c.l.b16 %v553
      %v634 = vunpack.c.l.b16 %v554
      %v635 = vunpack.c.l.b16 %v555
      %v636 = vpack.c.b16 %v621, %v620
      %v637 = vpack.c.b16 %v623, %v622
      %v638 = vpack.c.b16 %v625, %v624
      %v639 = vpack.c.b16 %v627, %v626
      %v640 = vpack.c.b16 %v629, %v628
      %v641 = vpack.c.b16 %v631, %v630
      %v642 = vpack.c.b16 %v633, %v632
      %v643 = vpack.c.b16 %v635, %v634
      %652 = vmatprep.subr.bf16.mxu0 0
      %653 = vmatpush1.bf16.msra.mxu0 %v643
      %654 = vmatprep.subr.bf16.mxu0 0
      %655 = vmatpush1.bf16.msra.mxu0 %v642
      %656 = vmatprep.subr.bf16.mxu0 0
      %657 = vmatpush1.bf16.msra.mxu0 %v641
      %658 = vmatprep.subr.bf16.mxu0 0
      %659 = vmatpush1.bf16.msra.mxu0 %v640
      %660 = vmatprep.subr.bf16.mxu0 0
      %661 = vmatpush1.bf16.msra.mxu0 %v639
      %662 = vmatprep.subr.bf16.mxu0 0
      %663 = vmatpush1.bf16.msra.mxu0 %v638
      %664 = vmatprep.subr.bf16.mxu0 0
      %665 = vmatpush1.bf16.msra.mxu0 %v637
      %666 = vmatprep.subr.bf16.mxu0 0
      %667 = vmatpush1.bf16.msra.mxu0 %v636
      %668 = vmatprep.subr.bf16.mxu0 0
      %669 = vmatpush2.bf16.msra.mxu0 0
      %670 = vmatprep.subr.bf16.mxu0 0
      %671 = vmatpush2.bf16.msra.mxu0 0
      %672 = vmatprep.subr.bf16.mxu0 0
      %673 = vmatpush2.bf16.msra.mxu0 0
      %674 = vmatprep.subr.bf16.mxu0 0
      %675 = vmatpush2.bf16.msra.mxu0 0
      %676 = vmatprep.subr.bf16.mxu0 0
      %677 = vmatpush2.bf16.msra.mxu0 0
      %678 = vmatprep.subr.bf16.mxu0 0
      %679 = vmatpush2.bf16.msra.mxu0 0
      %680 = vmatprep.subr.bf16.mxu0 0
      %681 = vmatpush2.bf16.msra.mxu0 0
      %682 = vmatprep.subr.bf16.mxu0 0
      %683 = vmatpush2.bf16.msra.mxu0 0
      %684 = vmatprep.mubr.bf16.mxu0 0
      %685 = vmatmul.mubr.bf16.gmra.mxu0 %v588
      %v686 = vpop.f32.mrf.mxu0
      %v687 = vadd.f32 0.0, %v686
      %v688 = vpop.f32.mrf.mxu0
      %v689 = vpop.f32.mrf.mxu0
      %v690 = vadd.f32 0.0, %v689
      %v691 = vpop.f32.mrf.mxu0
      %692 = vmatprep.mubr.bf16.mxu0 0
      %693 = vmatmul.mubr.bf16.gmra.mxu0 %v589
      %v694 = vpop.f32.mrf.mxu0
      %v695 = vadd.f32 0.0, %v694
      %v696 = vpop.f32.mrf.mxu0
      %v697 = vpop.f32.mrf.mxu0
      %v698 = vadd.f32 0.0, %v697
      %v699 = vpop.f32.mrf.mxu0
      %700 = vmatprep.mubr.bf16.mxu0 0
      %701 = vmatmul.mubr.bf16.gmra.mxu0 %v590
      %v702 = vpop.f32.mrf.mxu0
      %v703 = vadd.f32 0.0, %v702
      %v704 = vpop.f32.mrf.mxu0
      %v705 = vpop.f32.mrf.mxu0
      %v706 = vadd.f32 0.0, %v705
      %v707 = vpop.f32.mrf.mxu0
      %708 = vmatprep.mubr.bf16.mxu0 0
      %709 = vmatmul.mubr.bf16.gmra.mxu0 %v591
      %v710 = vpop.f32.mrf.mxu0
      %v711 = vadd.f32 0.0, %v710
      %v712 = vpop.f32.mrf.mxu0
      %v713 = vpop.f32.mrf.mxu0
      %v714 = vadd.f32 0.0, %v713
      %v715 = vpop.f32.mrf.mxu0
      %716 = vmatprep.mubr.bf16.mxu0 0
      %717 = vmatmul.mubr.bf16.gmra.mxu0 %v592
      %v718 = vpop.f32.mrf.mxu0
      %v719 = vadd.f32 0.0, %v718
      %v720 = vpop.f32.mrf.mxu0
      %v721 = vpop.f32.mrf.mxu0
      %v722 = vadd.f32 0.0, %v721
      %v723 = vpop.f32.mrf.mxu0
      %724 = vmatprep.mubr.bf16.mxu0 0
      %725 = vmatmul.mubr.bf16.gmra.mxu0 %v593
      %v726 = vpop.f32.mrf.mxu0
      %v727 = vadd.f32 0.0, %v726
      %v728 = vpop.f32.mrf.mxu0
      %v729 = vpop.f32.mrf.mxu0
      %v730 = vadd.f32 0.0, %v729
      %v731 = vpop.f32.mrf.mxu0
      %732 = vmatprep.mubr.bf16.mxu0 0
      %733 = vmatmul.mubr.bf16.gmra.mxu0 %v594
      %v734 = vpop.f32.mrf.mxu0
      %v735 = vadd.f32 0.0, %v734
      %v736 = vpop.f32.mrf.mxu0
      %v737 = vpop.f32.mrf.mxu0
      %v738 = vadd.f32 0.0, %v737
      %v739 = vpop.f32.mrf.mxu0
      %740 = vmatprep.mubr.bf16.mxu0 0
      %741 = vmatmul.mubr.bf16.gmra.mxu0 %v595
      %v742 = vpop.f32.mrf.mxu0
      %v743 = vadd.f32 0.0, %v742
      %v744 = vpop.f32.mrf.mxu0
      %v745 = vpop.f32.mrf.mxu0
      %v746 = vadd.f32 0.0, %v745
      %v747 = vpop.f32.mrf.mxu0
      %748 = vdwg.mxu0
      %v765 = vunpack.c.l.b16 %v508
      %v766 = vunpack.c.l.b16 %v509
      %v767 = vunpack.c.l.b16 %v510
      %v768 = vunpack.c.l.b16 %v511
      %v769 = vunpack.c.l.b16 %v512
      %v770 = vunpack.c.l.b16 %v513
      %v771 = vunpack.c.l.b16 %v514
      %v772 = vunpack.c.l.b16 %v515
      %v773 = vunpack.c.l.b16 %v516
      %v774 = vunpack.c.l.b16 %v517
      %v775 = vunpack.c.l.b16 %v518
      %v776 = vunpack.c.l.b16 %v519
      %v777 = vunpack.c.l.b16 %v520
      %v778 = vunpack.c.l.b16 %v521
      %v779 = vunpack.c.l.b16 %v522
      %v780 = vunpack.c.l.b16 %v523
      %v781 = vpack.c.b16 %v766, %v765
      %v782 = vpack.c.b16 %v768, %v767
      %v783 = vpack.c.b16 %v770, %v769
      %v784 = vpack.c.b16 %v772, %v771
      %v785 = vpack.c.b16 %v774, %v773
      %v786 = vpack.c.b16 %v776, %v775
      %v787 = vpack.c.b16 %v778, %v777
      %v788 = vpack.c.b16 %v780, %v779
      %797 = vmatprep.subr.bf16.mxu0 0
      %798 = vmatpush1.bf16.msra.mxu0 %v788
      %799 = vmatprep.subr.bf16.mxu0 0
      %800 = vmatpush1.bf16.msra.mxu0 %v787
      %801 = vmatprep.subr.bf16.mxu0 0
      %802 = vmatpush1.bf16.msra.mxu0 %v786
      %803 = vmatprep.subr.bf16.mxu0 0
      %804 = vmatpush1.bf16.msra.mxu0 %v785
      %805 = vmatprep.subr.bf16.mxu0 0
      %806 = vmatpush1.bf16.msra.mxu0 %v784
      %807 = vmatprep.subr.bf16.mxu0 0
      %808 = vmatpush1.bf16.msra.mxu0 %v783
      %809 = vmatprep.subr.bf16.mxu0 0
      %810 = vmatpush1.bf16.msra.mxu0 %v782
      %811 = vmatprep.subr.bf16.mxu0 0
      %812 = vmatpush1.bf16.msra.mxu0 %v781
      %813 = vmatprep.subr.bf16.mxu0 0
      %814 = vmatpush2.bf16.msra.mxu0 0
      %815 = vmatprep.subr.bf16.mxu0 0
      %816 = vmatpush2.bf16.msra.mxu0 0
      %817 = vmatprep.subr.bf16.mxu0 0
      %818 = vmatpush2.bf16.msra.mxu0 0
      %819 = vmatprep.subr.bf16.mxu0 0
      %820 = vmatpush2.bf16.msra.mxu0 0
      %821 = vmatprep.subr.bf16.mxu0 0
      %822 = vmatpush2.bf16.msra.mxu0 0
      %823 = vmatprep.subr.bf16.mxu0 0
      %824 = vmatpush2.bf16.msra.mxu0 0
      %825 = vmatprep.subr.bf16.mxu0 0
      %826 = vmatpush2.bf16.msra.mxu0 0
      %827 = vmatprep.subr.bf16.mxu0 0
      %828 = vmatpush2.bf16.msra.mxu0 0
      %829 = vmatprep.mubr.bf16.mxu0 0
      %830 = vmatmul.mubr.bf16.gmra.mxu0 %v500
      %v831 = vpop.f32.mrf.mxu0
      %v832 = vadd.f32 %v687, %v831
      %v833 = vpop.f32.mrf.mxu0
      %v834 = vpop.f32.mrf.mxu0
      %v835 = vadd.f32 %v690, %v834
      %v836 = vpop.f32.mrf.mxu0
      %837 = vmatprep.mubr.bf16.mxu0 0
      %838 = vmatmul.mubr.bf16.gmra.mxu0 %v501
      %v839 = vpop.f32.mrf.mxu0
      %v840 = vadd.f32 %v695, %v839
      %v841 = vpop.f32.mrf.mxu0
      %v842 = vpop.f32.mrf.mxu0
      %v843 = vadd.f32 %v698, %v842
      %v844 = vpop.f32.mrf.mxu0
      %845 = vmatprep.mubr.bf16.mxu0 0
      %846 = vmatmul.mubr.bf16.gmra.mxu0 %v502
      %v847 = vpop.f32.mrf.mxu0
      %v848 = vadd.f32 %v703, %v847
      %v849 = vpop.f32.mrf.mxu0
      %v850 = vpop.f32.mrf.mxu0
      %v851 = vadd.f32 %v706, %v850
      %v852 = vpop.f32.mrf.mxu0
      %853 = vmatprep.mubr.bf16.mxu0 0
      %854 = vmatmul.mubr.bf16.gmra.mxu0 %v503
      %v855 = vpop.f32.mrf.mxu0
      %v856 = vadd.f32 %v711, %v855
      %v857 = vpop.f32.mrf.mxu0
      %v858 = vpop.f32.mrf.mxu0
      %v859 = vadd.f32 %v714, %v858
      %v860 = vpop.f32.mrf.mxu0
      %861 = vmatprep.mubr.bf16.mxu0 0
      %862 = vmatmul.mubr.bf16.gmra.mxu0 %v504
      %v863 = vpop.f32.mrf.mxu0
      %v864 = vadd.f32 %v719, %v863
      %v865 = vpop.f32.mrf.mxu0
      %v866 = vpop.f32.mrf.mxu0
      %v867 = vadd.f32 %v722, %v866
      %v868 = vpop.f32.mrf.mxu0
      %869 = vmatprep.mubr.bf16.mxu0 0
      %870 = vmatmul.mubr.bf16.gmra.mxu0 %v505
      %v871 = vpop.f32.mrf.mxu0
      %v872 = vadd.f32 %v727, %v871
      %v873 = vpop.f32.mrf.mxu0
      %v874 = vpop.f32.mrf.mxu0
      %v875 = vadd.f32 %v730, %v874
      %v876 = vpop.f32.mrf.mxu0
      %877 = vmatprep.mubr.bf16.mxu0 0
      %878 = vmatmul.mubr.bf16.gmra.mxu0 %v506
      %v879 = vpop.f32.mrf.mxu0
      %v880 = vadd.f32 %v735, %v879
      %v881 = vpop.f32.mrf.mxu0
      %v882 = vpop.f32.mrf.mxu0
      %v883 = vadd.f32 %v738, %v882
      %v884 = vpop.f32.mrf.mxu0
      %885 = vmatprep.mubr.bf16.mxu0 0
      %886 = vmatmul.mubr.bf16.gmra.mxu0 %v507
      %v887 = vpop.f32.mrf.mxu0
      %v888 = vadd.f32 %v743, %v887
      %v889 = vpop.f32.mrf.mxu0
      %v890 = vpop.f32.mrf.mxu0
      %v891 = vadd.f32 %v746, %v890
      %v892 = vpop.f32.mrf.mxu0
      %893 = vdwg.mxu0
      %v894 = vld [vmem:[%s8] sm:$0x1]
      %v896 = vlaneseq
      %v897 = vshrl.u32 %v896, 7
      %v898 = vsub.s32 0, %v897
      %v899 = vrot.slane %v894, %v898
      %v901 = vmul.f32 %v832, %v899
      %v902 = vmul.f32 %v835, %v899
      %v903 = vmul.f32 %v840, %v899
      %v904 = vmul.f32 %v843, %v899
      %v905 = vmul.f32 %v848, %v899
      %v906 = vmul.f32 %v851, %v899
      %v907 = vmul.f32 %v856, %v899
      %v908 = vmul.f32 %v859, %v899
      %v909 = vmul.f32 %v864, %v899
      %v910 = vmul.f32 %v867, %v899
      %v911 = vmul.f32 %v872, %v899
      %v912 = vmul.f32 %v875, %v899
      %v913 = vmul.f32 %v880, %v899
      %v914 = vmul.f32 %v883, %v899
      %v915 = vmul.f32 %v888, %v899
      %v916 = vmul.f32 %v891, %v899
      %v917 = vld [vmem:[%s9] sm:$0x1]
      %v919 = vlaneseq
      %v920 = vshrl.u32 %v919, 7
      %v921 = vsub.s32 0, %v920
      %v922 = vrot.slane %v917, %v921
      %v924 = vadd.f32 %v901, %v922
      %v925 = vadd.f32 %v902, %v922
      %v926 = vadd.f32 %v903, %v922
      %v927 = vadd.f32 %v904, %v922
      %v928 = vadd.f32 %v905, %v922
      %v929 = vadd.f32 %v906, %v922
      %v930 = vadd.f32 %v907, %v922
      %v931 = vadd.f32 %v908, %v922
      %v932 = vadd.f32 %v909, %v922
      %v933 = vadd.f32 %v910, %v922
      %v934 = vadd.f32 %v911, %v922
      %v935 = vadd.f32 %v912, %v922
      %v936 = vadd.f32 %v913, %v922
      %v937 = vadd.f32 %v914, %v922
      %v938 = vadd.f32 %v915, %v922
      %v939 = vadd.f32 %v916, %v922
      %v940 = vmax.f32 %v924, 0.0
      %v941 = vmax.f32 %v925, 0.0
      %v942 = vmax.f32 %v926, 0.0
      %v943 = vmax.f32 %v927, 0.0
      %v944 = vmax.f32 %v928, 0.0
      %v945 = vmax.f32 %v929, 0.0
      %v946 = vmax.f32 %v930, 0.0
      %v947 = vmax.f32 %v931, 0.0
      %v948 = vmax.f32 %v932, 0.0
      %v949 = vmax.f32 %v933, 0.0
      %v950 = vmax.f32 %v934, 0.0
      %v951 = vmax.f32 %v935, 0.0
      %v952 = vmax.f32 %v936, 0.0
      %v953 = vmax.f32 %v937, 0.0
      %v954 = vmax.f32 %v938, 0.0
      %v955 = vmax.f32 %v939, 0.0
      %v956 = vpack.c.bf16 %v941, %v940
      %v957 = vpack.c.bf16 %v943, %v942
      %v958 = vpack.c.bf16 %v945, %v944
      %v959 = vpack.c.bf16 %v947, %v946
      %v960 = vpack.c.bf16 %v949, %v948
      %v961 = vpack.c.bf16 %v951, %v950
      %v962 = vpack.c.bf16 %v953, %v952
      %v963 = vpack.c.bf16 %v955, %v954
      %v972 = vunpack.c.l.b16 %v956
      %v973 = vunpack.c.h.b16 %v956
      %v974 = vunpack.c.l.b16 %v957
      %v975 = vunpack.c.h.b16 %v957
      %v976 = vunpack.c.l.b16 %v958
      %v977 = vunpack.c.h.b16 %v958
      %v978 = vunpack.c.l.b16 %v959
      %v979 = vunpack.c.h.b16 %v959
      %v980 = vunpack.c.l.b16 %v960
      %v981 = vunpack.c.h.b16 %v960
      %v982 = vunpack.c.l.b16 %v961
      %v983 = vunpack.c.h.b16 %v961
      %v984 = vunpack.c.l.b16 %v962
      %v985 = vunpack.c.h.b16 %v962
      %v986 = vunpack.c.l.b16 %v963
      %v987 = vunpack.c.h.b16 %v963
      %v988 = vpack.c.b16 %v972, %v972
      %v989 = vpack.c.b16 %v973, %v973
      %v990 = vpack.c.b16 %v974, %v974
      %v991 = vpack.c.b16 %v975, %v975
      %v992 = vpack.c.b16 %v976, %v976
      %v993 = vpack.c.b16 %v977, %v977
      %v994 = vpack.c.b16 %v978, %v978
      %v995 = vpack.c.b16 %v979, %v979
      %v996 = vpack.c.b16 %v980, %v980
      %v997 = vpack.c.b16 %v981, %v981
      %v998 = vpack.c.b16 %v982, %v982
      %v999 = vpack.c.b16 %v983, %v983
      %v1000 = vpack.c.b16 %v984, %v984
      %v1001 = vpack.c.b16 %v985, %v985
      %v1002 = vpack.c.b16 %v986, %v986
      %v1003 = vpack.c.b16 %v987, %v987
      %1020 = vst [vmem:[#allocation12] sm:$0xf] %v988
      %1021 = vst [vmem:[#allocation12 + $0x4] sm:$0xf] %v989
      %1022 = vst [vmem:[#allocation12 + $0x8] sm:$0xf] %v990
      %1023 = vst [vmem:[#allocation12 + $0xc] sm:$0xf] %v991
      %1024 = vst [vmem:[#allocation12 + $0x10] sm:$0xf] %v992
      %1025 = vst [vmem:[#allocation12 + $0x14] sm:$0xf] %v993
      %1026 = vst [vmem:[#allocation12 + $0x18] sm:$0xf] %v994
      %1027 = vst [vmem:[#allocation12 + $0x1c] sm:$0xf] %v995
      %1028 = vst [vmem:[#allocation12 + $0x20] sm:$0xf] %v996
      %1029 = vst [vmem:[#allocation12 + $0x24] sm:$0xf] %v997
      %1030 = vst [vmem:[#allocation12 + $0x28] sm:$0xf] %v998
      %1031 = vst [vmem:[#allocation12 + $0x2c] sm:$0xf] %v999
      %1032 = vst [vmem:[#allocation12 + $0x30] sm:$0xf] %v1000
      %1033 = vst [vmem:[#allocation12 + $0x34] sm:$0xf] %v1001
      %1034 = vst [vmem:[#allocation12 + $0x38] sm:$0xf] %v1002
      %1035 = vst [vmem:[#allocation12 + $0x3c] sm:$0xf] %v1003
    $region57: #{tpu_custom_call.1} parent=1 // pred_fallthru
      _
    // Predicated region
    $region58: #{tpu_custom_call.1} parent=1 // pred_check
      _
    $region59: #{tpu_custom_call.1} parent=1 // pred_check_branch
      %1037 = sbr.rel (0) target = $region61
    $region60: #{tpu_custom_call.1} parent=1 // pred_region
      %s1039 = ssub.s32 1024, 1024
      %1040 = vsyncadd [#allocation8], %s1039
      %s1041 = sshll.u32 [#allocation12], 4
      %s1042 = int_to_ptr.vmem [resolvable:$true] %s1041
      %1047 = dma.vmem_to_hbm [thread:$0]  %s1042, 1024, %s10, [#allocation8], 64, 64, 4
    $region61: #{tpu_custom_call.1} parent=1 // pred_fallthru
      _
    // Predicated region
    $region62: #{tpu_custom_call.1} parent=1 // pred_check
      _
    $region63: #{tpu_custom_call.1} parent=1 // pred_check_branch
      %1049 = sbr.rel (0) target = $region65
    $region64: #{tpu_custom_call.1} parent=1 // pred_region
      %1050 = dma.done [#allocation8], 1024
    $region65: #{tpu_custom_call.1} parent=1 // pred_fallthru
      _
    %1051 = vsyncpa [#allocation7], 1
    %1052 = vsyncpa [#allocation10], 1
    %1053 = vsyncpa [#allocation8], 1

</llo_original>
